<compile_context>
chip_gen: v7x
topology: tpu7x:2x2x1
jax: 0.10.0
libtpu: 0.0.40
codegen_flags: <defaults>
</compile_context>

<pallas_src>
import functools
from functools import partial

import numpy as np

import jax
import jax.numpy as jnp
from jax import lax
from jax.experimental import pallas as pl
from jax.experimental.pallas import tpu as pltpu


_FLAT_POOL_MAT_BYTES = 1 << 20   # use the single-matmul path only if P fits here


# ---------------------------------------------------------------------------
# Kernels
# ---------------------------------------------------------------------------

def _l_exp_flat_kernel(x_ref, p_ref, o_ref, *, scale, mean_val):
    """Small-image path.

    x_ref: (tb, c*h*w) native dtype (lane-dense); p_ref: (c*h*w, hp*wp) 0/1 in
    the same dtype.  One MXU matmul (f32 accumulate) does channel-mean +
    average pooling; scale/mean are applied in f32 afterwards.
    """
    pooled = jnp.dot(x_ref[...], p_ref[...],
                     preferred_element_type=jnp.float32)      # (tb, hp*wp) f32
    d = pooled * scale - mean_val
    o_ref[...] = d * d


def _l_exp_factored_kernel(x_ref, a_ref, b_ref, o_ref, *, scale, mean_val, tb):
    """Large-image path: pooled = A'(hp, c*h) @ x(c*h, w) @ B(w, wp).

    The channel sum is folded into A' (0/1, native dtype) so the big matmul is
    native-dtype x native-dtype -> f32 accumulate, and no (c,h,w) f32 temporary
    is materialized.  B is f32 (the second matmul is tiny).
    """
    a = a_ref[...]     # (hp, c*h), 0/1 in x dtype
    bm = b_ref[...]    # (w, wp),   0/1 in f32

    def body(t, carry):
        xt = x_ref[t]                                                  # (c*h, w)
        tmp = jnp.dot(a, xt, preferred_element_type=jnp.float32)       # (hp, w)
        pooled = jnp.dot(tmp, bm, preferred_element_type=jnp.float32)  # (hp, wp)
        d = pooled * scale - mean_val
        o_ref[t] = d * d
        return carry

    lax.fori_loop(0, tb, body, 0, unroll=True)


# ---------------------------------------------------------------------------
# Constant pooling matrices (numpy, cached per shape/dtype)
# ---------------------------------------------------------------------------

@functools.lru_cache(maxsize=32)
def _flat_pool_matrix(c, h, w, patch, dtype):
    """(c*h*w, hp*wp) 0/1 indicator in `dtype` (channel-mean + avg-pool fused)."""
    hp, wp = h // patch, w // patch
    hpwp = hp * wp
    k = np.arange(c * h * w)
    rc = k % (h * w)
    row, col = rc // w, rc % w
    valid = (row // patch < hp) & (col // patch < wp)    # floor-mode border drop
    q = np.where(valid, (row // patch) * wp + (col // patch), -1)
    p = (q[:, None] == np.arange(hpwp)[None, :])
    return jnp.asarray(p, dtype=dtype)


@functools.lru_cache(maxsize=32)
def _factored_pool_matrices(c, h, w, patch, dtype):
    """A' (hp, c*h) 0/1 in `dtype` (folds the channel sum); B (w, wp) 0/1 f32."""
    hp, wp = h // patch, w // patch
    rows = np.arange(c * h) % h
    a = (rows[None, :] // patch == np.arange(hp)[:, None])
    b = (np.arange(w)[:, None] // patch == np.arange(wp)[None, :])
    return jnp.asarray(a, dtype=dtype), jnp.asarray(b, dtype=jnp.float32)


# ---------------------------------------------------------------------------
# Block sizing
# ---------------------------------------------------------------------------

def _tpu_block_params():
    """Returns (target input-block bytes, VMEM capacity or None)."""
    vmem_cap = None
    try:
        vmem_cap = int(pltpu.get_tpu_info().vmem_capacity_bytes)
    except Exception:
        vmem_cap = None
    if vmem_cap is not None and vmem_cap >= (100 << 20):
        return 8 << 20, vmem_cap      # v5e / v6e: 128 MiB VMEM -> bigger blocks
    return 4 << 20, vmem_cap          # v7x (64 MiB/TC) or unknown


def _pick_tb(b, bytes_per_sample, target_bytes, *, sublane_block):
    """Samples per grid step.

    sublane_block=True  (flat path): tb is the sublane dim of the (tb, c*h*w)
        block, so any sub-extent block must be a multiple of 8.
    sublane_block=False (factored path): tb is a leading, un-tiled dim of the
        (tb, c*h, w) block, so any tb >= 1 is legal; size by bytes only.
    """
    tb = max(1, min(b, target_bytes // max(1, bytes_per_sample)))
    if b > 1:
        tb = min(tb, pl.cdiv(b, 2))   # >= 2 chunks -> both v7x TCs get work
    if not sublane_block or tb >= b:
        return min(tb, b)
    tb8 = (tb // 8) * 8
    if tb8 >= 8:
        return tb8
    # Can't make a legal sub-block smaller than 8 rows: use the full extent
    # when b itself is small, else the minimum legal 8-row block.
    return b if b <= 8 else 8


# ---------------------------------------------------------------------------
# Wrapper
# ---------------------------------------------------------------------------

def l_exp_pallas(x, patch_size, mean_val):
    b, c, h, w = x.shape
    patch = int(patch_size)
    hp, wp = h // patch, w // patch
    assert hp > 0 and wp > 0, "patch_size larger than the image"
    hpwp = hp * wp

    dtype = jnp.dtype(x.dtype)
    itemsize = dtype.itemsize
    chw = c * h * w

    mean_val = float(mean_val)
    scale = 1.0 / float(c * patch * patch)
    inv_count = 1.0 / float(b * hpwp)

    target_bytes, vmem_cap = _tpu_block_params()
    bytes_per_sample = chw * itemsize

    flat_p_bytes = chw * hpwp * itemsize
    hpwp_cap = 64 if itemsize >= 4 else 256   # keep v5e memory-bound for f32
    use_flat = (flat_p_bytes <= _FLAT_POOL_MAT_BYTES) and (hpwp <= hpwp_cap)

    if use_flat:
        # ---- lane-dense single-matmul path (small images) ----
        tb = _pick_tb(b, bytes_per_sample, target_bytes, sublane_block=True)
        num_chunks = pl.cdiv(b, tb)
        p_mat = _flat_pool_matrix(c, h, w, patch, dtype)
        x_in = x.reshape(b, chw)              # free for contiguous NCHW
        kernel = partial(_l_exp_flat_kernel, scale=scale, mean_val=mean_val)
        grid_spec = pltpu.PrefetchScalarGridSpec(
            num_scalar_prefetch=0,
            grid=(num_chunks,),
            in_specs=[
                pl.BlockSpec((tb, chw), lambda i: (i, 0)),
                pl.BlockSpec((chw, hpwp), lambda i: (0, 0)),
            ],
            out_specs=pl.BlockSpec((tb, hpwp), lambda i: (i, 0)),
        )
        out_shape = jax.ShapeDtypeStruct((num_chunks * tb, hpwp), jnp.float32)
        flops = 2.0 * b * chw * hpwp
        bytes_accessed = (b * chw * itemsize + flat_p_bytes
                          + num_chunks * tb * hpwp * 4)
        vmem_need = (2 * tb * chw * itemsize      # x (double-buffered)
                     + 2 * flat_p_bytes           # P (constant; <= 1 MiB, 2x is cheap)
                     + 2 * tb * hpwp * 4)         # out
        args = (x_in, p_mat)
    else:
        # ---- factored A' @ x @ B path (large images) ----
        tb = _pick_tb(b, bytes_per_sample, target_bytes, sublane_block=False)
        num_chunks = pl.cdiv(b, tb)
        a_mat, b_mat = _factored_pool_matrices(c, h, w, patch, dtype)
        x_in = x.reshape(b, c * h, w)          # free for contiguous NCHW
        kernel = partial(_l_exp_factored_kernel, scale=scale,
                         mean_val=mean_val, tb=tb)
        grid_spec = pltpu.PrefetchScalarGridSpec(
            num_scalar_prefetch=0,
            grid=(num_chunks,),
            in_specs=[
                pl.BlockSpec((tb, c * h, w), lambda i: (i, 0, 0)),
                pl.BlockSpec((hp, c * h), lambda i: (0, 0)),
                pl.BlockSpec((w, wp), lambda i: (0, 0)),
            ],
            out_specs=pl.BlockSpec((tb, hp, wp), lambda i: (i, 0, 0)),
        )
        out_shape = jax.ShapeDtypeStruct((num_chunks * tb, hp, wp), jnp.float32)
        flops = float(b) * (2.0 * hp * (c * h) * w + 2.0 * hp * w * wp)
        bytes_accessed = (b * chw * itemsize
                          + hp * c * h * itemsize + w * wp * 4
                          + num_chunks * tb * hpwp * 4)
        vmem_need = (2 * tb * chw * itemsize
                     + 2 * (hp * c * h * itemsize + w * wp * 4)
                     + 2 * tb * hpwp * 4)
        args = (x_in, a_mat, b_mat)

    # Tight, generation-aware VMEM request (never below what the blocks need).
    vmem_limit = int(max(vmem_need + (4 << 20), 16 << 20))
    if vmem_cap is not None:
        vmem_limit = int(max(min(vmem_limit, (vmem_cap * 3) // 4),
                             vmem_need + (2 << 20)))

    out = pl.pallas_call(
        kernel,
        out_shape=out_shape,
        grid_spec=grid_spec,
        compiler_params=pltpu.CompilerParams(
            dimension_semantics=("parallel",),   # independent chunks -> both v7x TCs
            vmem_limit_bytes=vmem_limit,
        ),
        cost_estimate=pl.CostEstimate(
            flops=int(flops),
            transcendentals=0,
            bytes_accessed=int(bytes_accessed),
        ),
    )(*args)

    # Tiny final reduction + normalization in the wrapper (b*hp*wp elements).
    # Rows >= b (padding of the ragged trailing chunk) may hold garbage
    # (possibly NaN/Inf) and MUST be sliced away BEFORE the sum.
    partial_sq = out.reshape(num_chunks * tb, hpwp)[:b]
    return (jnp.sum(partial_sq) * jnp.float32(inv_count)).astype(jnp.float32)


# ---------------------------------------------------------------------------
# Pure-JAX reference
# ---------------------------------------------------------------------------

def _l_exp_reference(x, patch_size, mean_val):
    b, c, h, w = x.shape
    hp, wp = h // patch_size, w // patch_size
    xm = jnp.mean(x.astype(jnp.float32), axis=1, keepdims=True)          # (b,1,h,w)
    xm = xm[:, :, :hp * patch_size, :wp * patch_size]
    pooled = xm.reshape(b, 1, hp, patch_size, wp, patch_size).mean(axis=(3, 5))
    return jnp.mean((pooled - jnp.float32(mean_val)) ** 2)


if __name__ == "__main__":
    # Test 1: small f32 config -> flat lane-dense single-matmul path.
    patch_size, mean_val = 4, 0.6
    key = jax.random.PRNGKey(0)
    x = jax.random.uniform(key, (2, 4, 16, 16), dtype=jnp.float32)

    d = jax.block_until_ready(l_exp_pallas(x, patch_size, mean_val))
    d_ref = _l_exp_reference(x, patch_size, mean_val)
    assert jnp.allclose(d, d_ref, rtol=1e-4, atol=1e-6), (d, d_ref)

    # Test 2: larger bf16 image -> factored A' @ x @ B path, native-dtype MXU
    # matmuls, 2-chunk parallel grid, ragged trailing chunk.
    x2 = jax.random.uniform(jax.random.PRNGKey(1), (3, 3, 128, 128),
                            dtype=jnp.float32).astype(jnp.bfloat16)
    d2 = jax.block_until_ready(l_exp_pallas(x2, 8, 0.5))
    d2_ref = _l_exp_reference(x2, 8, 0.5)
    assert jnp.allclose(d2, d2_ref, rtol=2e-4, atol=1e-6), (d2, d2_ref)

    print("KERNEL_OK")
</pallas_src>

<mosaic_0001>
module attributes {stable_mosaic.version = 11 : i64} {
  func.func @_l_exp_flat_kernel(%arg0: i32, %arg1: memref<2x1024xf32, #tpu.memory_space<vmem>>, %arg2: memref<1024x16xf32, #tpu.memory_space<vmem>>, %arg3: memref<2x16xf32, #tpu.memory_space<vmem>>) attributes {dimension_semantics = [#tpu.dimension_semantics<parallel>], iteration_bounds = array<i64: 1>, scalar_prefetch = 0 : i64, scratch_operands = 0 : i64, tpu.core_type = #tpu.core_type<tc>, window_params = [{transform_indices = @transform_0, window_bounds = array<i64: 2, 1024>}, {pipeline_mode = #tpu.pipeline_mode<synchronous>, transform_indices = @transform_1, window_bounds = array<i64: 1024, 16>}, {transform_indices = @transform_2, window_bounds = array<i64: 2, 16>}]} {
    %c0 = arith.constant 0 : index
    %c0_0 = arith.constant 0 : index
    %0 = vector.load %arg1[%c0, %c0_0] : memref<2x1024xf32, #tpu.memory_space<vmem>>, vector<2x1024xf32>
    %c0_1 = arith.constant 0 : index
    %c0_2 = arith.constant 0 : index
    %1 = vector.load %arg2[%c0_1, %c0_2] : memref<1024x16xf32, #tpu.memory_space<vmem>>, vector<1024x16xf32>
    %cst = arith.constant dense<0.000000e+00> : vector<2x16xf32>
    %2 = tpu.matmul %0, %1, %cst {dimension_numbers = #tpu.dot_dimension_numbers<[1], [0], [0], [1], [0, 0, 1, 1], [], []>} : vector<2x1024xf32>, vector<1024x16xf32>, vector<2x16xf32> -> vector<2x16xf32>
    %cst_3 = arith.constant 1.562500e-02 : f32
    %3 = vector.broadcast %cst_3 : f32 to vector<2x16xf32>
    %4 = arith.mulf %2, %3 : vector<2x16xf32>
    %cst_4 = arith.constant 6.000000e-01 : f32
    %5 = vector.broadcast %cst_4 : f32 to vector<2x16xf32>
    %6 = arith.subf %4, %5 : vector<2x16xf32>
    %7 = arith.mulf %6, %6 : vector<2x16xf32>
    %c0_5 = arith.constant 0 : index
    %c0_6 = arith.constant 0 : index
    %8 = vector.load %arg3[%c0_5, %c0_6] : memref<2x16xf32, #tpu.memory_space<vmem>>, vector<2x16xf32>
    tpu.vector_store %arg3[%c0_5, %c0_6], %7 {strides = array<i32>} : memref<2x16xf32, #tpu.memory_space<vmem>>, vector<2x16xf32>,
    return
  }
  func.func @transform_0(%arg0: i32) -> (i32, i32) {
    %c0_i32 = arith.constant 0 : i32
    %c0_i32_0 = arith.constant 0 : i32
    return %arg0, %c0_i32 : i32, i32
  }
  func.func @transform_1(%arg0: i32) -> (i32, i32) {
    %c0_i32 = arith.constant 0 : i32
    %c0_i32_0 = arith.constant 0 : i32
    %c0_i32_1 = arith.constant 0 : i32
    return %c0_i32, %c0_i32_0 : i32, i32
  }
  func.func @transform_2(%arg0: i32) -> (i32, i32) {
    %c0_i32 = arith.constant 0 : i32
    %c0_i32_0 = arith.constant 0 : i32
    return %arg0, %c0_i32 : i32, i32
  }
}

</mosaic_0001>

<llo_original>
// kernel: tpu_custom_call.1
$region0: #{tpu_custom_call.1}
  #allocation0 [shape = 'u32[]', space=smem, size = 0x4, offset = 0x4, fixed_abs, tag = 'smem constant byte address 0x4 - core index']
  #allocation1 [shape = 'u32[144,128]{1,0:T(1,128)}', space=vmem, size = 0x12000, scoped, tag = 'internal scratch']
  %s0 = inlined_call_operand.vmem [shape: f32[2,1024], index: 0, kind: input, shape index: {}]
  %s1 = inlined_call_operand.vmem [shape: f32[1024,16], index: 1, kind: input, shape index: {}]
  %s2 = inlined_call_operand.hbm [shape: f32[2,16], index: 2, kind: output, shape index: {}]
  %s3 = sld [smem:[#allocation0]]
  $region18: #{tpu_custom_call.1} parent=0
    _
  %s5 = ssub.s32 1, %s3
  %s6 = scalar_select 0, %s5, %s3
  $region1: #{tpu_custom_call.1} parent=0
    #allocation2 [shape = 'u8[1024]{0}', space=vmem, size = 0x400, scoped, tag = 'output window, operand 0, single buffered']
    #allocation3 [shape = 's32[1]{0}', space=sflag, size = 0x4, scoped, tag = 'scoped memory for tpu_custom_call.1']
    %7 = vsyncpa [#allocation3], 0
    // Predicated region
    $region2: #{tpu_custom_call.1} parent=1 // pred_check
      _
    $region3: #{tpu_custom_call.1} parent=1 // pred_check_branch
      %9 = sbr.rel (0) target = $region5
    $region4: #{tpu_custom_call.1} parent=1 // pred_region
      _
    $region5: #{tpu_custom_call.1} parent=1 // pred_fallthru
      _
    // Predicated region
    $region6: #{tpu_custom_call.1} parent=1 // pred_check
      _
    $region7: #{tpu_custom_call.1} parent=1 // pred_check_branch
      %11 = sbr.rel (0) target = $region9
    $region8: #{tpu_custom_call.1} parent=1 // pred_region
      _
    $region9: #{tpu_custom_call.1} parent=1 // pred_fallthru
      _
    %v12 = vld [vmem:[%s0] sm:$0xff]
    %v13 = vld [vmem:[%s0 + $0x8] sm:$0xff]
    %v14 = vld [vmem:[%s1] sm:$0xff]
    %v15 = vld [vmem:[%s1 + $0x8] sm:$0xff]
    %v16 = vld [vmem:[%s1 + $0x10] sm:$0xff]
    %v17 = vld [vmem:[%s1 + $0x18] sm:$0xff]
    %v18 = vld [vmem:[%s1 + $0x20] sm:$0xff]
    %v19 = vld [vmem:[%s1 + $0x28] sm:$0xff]
    %v20 = vld [vmem:[%s1 + $0x30] sm:$0xff]
    %v21 = vld [vmem:[%s1 + $0x38] sm:$0xff]
    %v22 = vld [vmem:[%s1 + $0x40] sm:$0xff]
    %v23 = vld [vmem:[%s1 + $0x48] sm:$0xff]
    %v24 = vld [vmem:[%s1 + $0x50] sm:$0xff]
    %v25 = vld [vmem:[%s1 + $0x58] sm:$0xff]
    %v26 = vld [vmem:[%s1 + $0x60] sm:$0xff]
    %v27 = vld [vmem:[%s1 + $0x68] sm:$0xff]
    %v28 = vld [vmem:[%s1 + $0x70] sm:$0xff]
    %v29 = vld [vmem:[%s1 + $0x78] sm:$0xff]
    %v30 = vld [vmem:[%s1 + $0x80] sm:$0xff]
    %v31 = vld [vmem:[%s1 + $0x88] sm:$0xff]
    %v32 = vld [vmem:[%s1 + $0x90] sm:$0xff]
    %v33 = vld [vmem:[%s1 + $0x98] sm:$0xff]
    %v34 = vld [vmem:[%s1 + $0xa0] sm:$0xff]
    %v35 = vld [vmem:[%s1 + $0xa8] sm:$0xff]
    %v36 = vld [vmem:[%s1 + $0xb0] sm:$0xff]
    %v37 = vld [vmem:[%s1 + $0xb8] sm:$0xff]
    %v38 = vld [vmem:[%s1 + $0xc0] sm:$0xff]
    %v39 = vld [vmem:[%s1 + $0xc8] sm:$0xff]
    %v40 = vld [vmem:[%s1 + $0xd0] sm:$0xff]
    %v41 = vld [vmem:[%s1 + $0xd8] sm:$0xff]
    %v42 = vld [vmem:[%s1 + $0xe0] sm:$0xff]
    %v43 = vld [vmem:[%s1 + $0xe8] sm:$0xff]
    %v44 = vld [vmem:[%s1 + $0xf0] sm:$0xff]
    %v45 = vld [vmem:[%s1 + $0xf8] sm:$0xff]
    %v46 = vld [vmem:[%s1 + $0x100] sm:$0xff]
    %v47 = vld [vmem:[%s1 + $0x108] sm:$0xff]
    %v48 = vld [vmem:[%s1 + $0x110] sm:$0xff]
    %v49 = vld [vmem:[%s1 + $0x118] sm:$0xff]
    %v50 = vld [vmem:[%s1 + $0x120] sm:$0xff]
    %v51 = vld [vmem:[%s1 + $0x128] sm:$0xff]
    %v52 = vld [vmem:[%s1 + $0x130] sm:$0xff]
    %v53 = vld [vmem:[%s1 + $0x138] sm:$0xff]
    %v54 = vld [vmem:[%s1 + $0x140] sm:$0xff]
    %v55 = vld [vmem:[%s1 + $0x148] sm:$0xff]
    %v56 = vld [vmem:[%s1 + $0x150] sm:$0xff]
    %v57 = vld [vmem:[%s1 + $0x158] sm:$0xff]
    %v58 = vld [vmem:[%s1 + $0x160] sm:$0xff]
    %v59 = vld [vmem:[%s1 + $0x168] sm:$0xff]
    %v60 = vld [vmem:[%s1 + $0x170] sm:$0xff]
    %v61 = vld [vmem:[%s1 + $0x178] sm:$0xff]
    %v62 = vld [vmem:[%s1 + $0x180] sm:$0xff]
    %v63 = vld [vmem:[%s1 + $0x188] sm:$0xff]
    %v64 = vld [vmem:[%s1 + $0x190] sm:$0xff]
    %v65 = vld [vmem:[%s1 + $0x198] sm:$0xff]
    %v66 = vld [vmem:[%s1 + $0x1a0] sm:$0xff]
    %v67 = vld [vmem:[%s1 + $0x1a8] sm:$0xff]
    %v68 = vld [vmem:[%s1 + $0x1b0] sm:$0xff]
    %v69 = vld [vmem:[%s1 + $0x1b8] sm:$0xff]
    %v70 = vld [vmem:[%s1 + $0x1c0] sm:$0xff]
    %v71 = vld [vmem:[%s1 + $0x1c8] sm:$0xff]
    %v72 = vld [vmem:[%s1 + $0x1d0] sm:$0xff]
    %v73 = vld [vmem:[%s1 + $0x1d8] sm:$0xff]
    %v74 = vld [vmem:[%s1 + $0x1e0] sm:$0xff]
    %v75 = vld [vmem:[%s1 + $0x1e8] sm:$0xff]
    %v76 = vld [vmem:[%s1 + $0x1f0] sm:$0xff]
    %v77 = vld [vmem:[%s1 + $0x1f8] sm:$0xff]
    %v78 = vld [vmem:[%s1 + $0x200] sm:$0xff]
    %v79 = vld [vmem:[%s1 + $0x208] sm:$0xff]
    %v80 = vld [vmem:[%s1 + $0x210] sm:$0xff]
    %v81 = vld [vmem:[%s1 + $0x218] sm:$0xff]
    %v82 = vld [vmem:[%s1 + $0x220] sm:$0xff]
    %v83 = vld [vmem:[%s1 + $0x228] sm:$0xff]
    %v84 = vld [vmem:[%s1 + $0x230] sm:$0xff]
    %v85 = vld [vmem:[%s1 + $0x238] sm:$0xff]
    %v86 = vld [vmem:[%s1 + $0x240] sm:$0xff]
    %v87 = vld [vmem:[%s1 + $0x248] sm:$0xff]
    %v88 = vld [vmem:[%s1 + $0x250] sm:$0xff]
    %v89 = vld [vmem:[%s1 + $0x258] sm:$0xff]
    %v90 = vld [vmem:[%s1 + $0x260] sm:$0xff]
    %v91 = vld [vmem:[%s1 + $0x268] sm:$0xff]
    %v92 = vld [vmem:[%s1 + $0x270] sm:$0xff]
    %v93 = vld [vmem:[%s1 + $0x278] sm:$0xff]
    %v94 = vld [vmem:[%s1 + $0x280] sm:$0xff]
    %v95 = vld [vmem:[%s1 + $0x288] sm:$0xff]
    %v96 = vld [vmem:[%s1 + $0x290] sm:$0xff]
    %v97 = vld [vmem:[%s1 + $0x298] sm:$0xff]
    %v98 = vld [vmem:[%s1 + $0x2a0] sm:$0xff]
    %v99 = vld [vmem:[%s1 + $0x2a8] sm:$0xff]
    %v100 = vld [vmem:[%s1 + $0x2b0] sm:$0xff]
    %v101 = vld [vmem:[%s1 + $0x2b8] sm:$0xff]
    %v102 = vld [vmem:[%s1 + $0x2c0] sm:$0xff]
    %v103 = vld [vmem:[%s1 + $0x2c8] sm:$0xff]
    %v104 = vld [vmem:[%s1 + $0x2d0] sm:$0xff]
    %v105 = vld [vmem:[%s1 + $0x2d8] sm:$0xff]
    %v106 = vld [vmem:[%s1 + $0x2e0] sm:$0xff]
    %v107 = vld [vmem:[%s1 + $0x2e8] sm:$0xff]
    %v108 = vld [vmem:[%s1 + $0x2f0] sm:$0xff]
    %v109 = vld [vmem:[%s1 + $0x2f8] sm:$0xff]
    %v110 = vld [vmem:[%s1 + $0x300] sm:$0xff]
    %v111 = vld [vmem:[%s1 + $0x308] sm:$0xff]
    %v112 = vld [vmem:[%s1 + $0x310] sm:$0xff]
    %v113 = vld [vmem:[%s1 + $0x318] sm:$0xff]
    %v114 = vld [vmem:[%s1 + $0x320] sm:$0xff]
    %v115 = vld [vmem:[%s1 + $0x328] sm:$0xff]
    %v116 = vld [vmem:[%s1 + $0x330] sm:$0xff]
    %v117 = vld [vmem:[%s1 + $0x338] sm:$0xff]
    %v118 = vld [vmem:[%s1 + $0x340] sm:$0xff]
    %v119 = vld [vmem:[%s1 + $0x348] sm:$0xff]
    %v120 = vld [vmem:[%s1 + $0x350] sm:$0xff]
    %v121 = vld [vmem:[%s1 + $0x358] sm:$0xff]
    %v122 = vld [vmem:[%s1 + $0x360] sm:$0xff]
    %v123 = vld [vmem:[%s1 + $0x368] sm:$0xff]
    %v124 = vld [vmem:[%s1 + $0x370] sm:$0xff]
    %v125 = vld [vmem:[%s1 + $0x378] sm:$0xff]
    %v126 = vld [vmem:[%s1 + $0x380] sm:$0xff]
    %v127 = vld [vmem:[%s1 + $0x388] sm:$0xff]
    %v128 = vld [vmem:[%s1 + $0x390] sm:$0xff]
    %v129 = vld [vmem:[%s1 + $0x398] sm:$0xff]
    %v130 = vld [vmem:[%s1 + $0x3a0] sm:$0xff]
    %v131 = vld [vmem:[%s1 + $0x3a8] sm:$0xff]
    %v132 = vld [vmem:[%s1 + $0x3b0] sm:$0xff]
    %v133 = vld [vmem:[%s1 + $0x3b8] sm:$0xff]
    %v134 = vld [vmem:[%s1 + $0x3c0] sm:$0xff]
    %v135 = vld [vmem:[%s1 + $0x3c8] sm:$0xff]
    %v136 = vld [vmem:[%s1 + $0x3d0] sm:$0xff]
    %v137 = vld [vmem:[%s1 + $0x3d8] sm:$0xff]
    %v138 = vld [vmem:[%s1 + $0x3e0] sm:$0xff]
    %v139 = vld [vmem:[%s1 + $0x3e8] sm:$0xff]
    %v140 = vld [vmem:[%s1 + $0x3f0] sm:$0xff]
    %v141 = vld [vmem:[%s1 + $0x3f8] sm:$0xff]
    %v144 = vcombine.high %v12, %v12
    %v146 = vunpack.c.l.s4 1983009808
    %v147 = vunpack.c.0.s8 %v146
    %v148 = vlaneseq
    %v149 = vshrl.u32 %v148, 7
    %v150 = vsub.s32 %v147, %v149
    %v151 = vrot.slane %v12, %v150
    %v153 = vunpack.c.l.s4 1983009808
    %v154 = vunpack.c.0.s8 %v153
    %v155 = vlaneseq
    %v156 = vshrl.u32 %v155, 7
    %v157 = vsub.s32 %v154, %v156
    %v158 = vrot.slane %v144, %v157
    %v159 = vcombine.high %v151, %v151
    %v160 = vcombine.high %v158, %v158
    %v161 = vcombine.high %v13, %v13
    %v163 = vunpack.c.l.s4 1983009808
    %v164 = vunpack.c.0.s8 %v163
    %v165 = vlaneseq
    %v166 = vshrl.u32 %v165, 7
    %v167 = vsub.s32 %v164, %v166
    %v168 = vrot.slane %v13, %v167
    %v170 = vunpack.c.l.s4 1983009808
    %v171 = vunpack.c.0.s8 %v170
    %v172 = vlaneseq
    %v173 = vshrl.u32 %v172, 7
    %v174 = vsub.s32 %v171, %v173
    %v175 = vrot.slane %v161, %v174
    %v176 = vcombine.high %v168, %v168
    %v177 = vcombine.high %v175, %v175
    %186 = vmatprep.subr.mxu0 0.0
    %187 = vmatpush1.msra.mxu0 %v14
    %188 = vmatprep.subr.mxu0 0.0
    %189 = vmatpush1.msra.mxu0 %v15
    %190 = vmatprep.subr.mxu0 0.0
    %191 = vmatpush1.msra.mxu0 %v16
    %192 = vmatprep.subr.mxu0 0.0
    %193 = vmatpush1.msra.mxu0 %v17
    %194 = vmatprep.subr.mxu0 0.0
    %195 = vmatpush1.msra.mxu0 %v18
    %196 = vmatprep.subr.mxu0 0.0
    %197 = vmatpush1.msra.mxu0 %v19
    %198 = vmatprep.subr.mxu0 0.0
    %199 = vmatpush1.msra.mxu0 %v20
    %200 = vmatprep.subr.mxu0 0.0
    %201 = vmatpush1.msra.mxu0 %v21
    %202 = vmatprep.subr.mxu0 0.0
    %203 = vmatpush1.msra.mxu0 %v22
    %204 = vmatprep.subr.mxu0 0.0
    %205 = vmatpush1.msra.mxu0 %v23
    %206 = vmatprep.subr.mxu0 0.0
    %207 = vmatpush1.msra.mxu0 %v24
    %208 = vmatprep.subr.mxu0 0.0
    %209 = vmatpush1.msra.mxu0 %v25
    %210 = vmatprep.subr.mxu0 0.0
    %211 = vmatpush1.msra.mxu0 %v26
    %212 = vmatprep.subr.mxu0 0.0
    %213 = vmatpush1.msra.mxu0 %v27
    %214 = vmatprep.subr.mxu0 0.0
    %215 = vmatpush1.msra.mxu0 %v28
    %216 = vmatprep.subr.mxu0 0.0
    %217 = vmatpush1.msra.mxu0 %v29
    %218 = vmatprep.subr.mxu0 0.0
    %219 = vmatpush1.msra.mxu0 %v30
    %220 = vmatprep.subr.mxu0 0.0
    %221 = vmatpush1.msra.mxu0 %v31
    %222 = vmatprep.subr.mxu0 0.0
    %223 = vmatpush1.msra.mxu0 %v32
    %224 = vmatprep.subr.mxu0 0.0
    %225 = vmatpush1.msra.mxu0 %v33
    %226 = vmatprep.subr.mxu0 0.0
    %227 = vmatpush1.msra.mxu0 %v34
    %228 = vmatprep.subr.mxu0 0.0
    %229 = vmatpush1.msra.mxu0 %v35
    %230 = vmatprep.subr.mxu0 0.0
    %231 = vmatpush1.msra.mxu0 %v36
    %232 = vmatprep.subr.mxu0 0.0
    %233 = vmatpush1.msra.mxu0 %v37
    %234 = vmatprep.subr.mxu0 0.0
    %235 = vmatpush1.msra.mxu0 %v38
    %236 = vmatprep.subr.mxu0 0.0
    %237 = vmatpush1.msra.mxu0 %v39
    %238 = vmatprep.subr.mxu0 0.0
    %239 = vmatpush1.msra.mxu0 %v40
    %240 = vmatprep.subr.mxu0 0.0
    %241 = vmatpush1.msra.mxu0 %v41
    %242 = vmatprep.subr.mxu0 0.0
    %243 = vmatpush1.msra.mxu0 %v42
    %244 = vmatprep.subr.mxu0 0.0
    %245 = vmatpush1.msra.mxu0 %v43
    %246 = vmatprep.subr.mxu0 0.0
    %247 = vmatpush1.msra.mxu0 %v44
    %248 = vmatprep.subr.mxu0 0.0
    %249 = vmatpush1.msra.mxu0 %v45
    %250 = vmatprep.mubr.f32.mxu0 %v159
    %251 = vmatmul.mubr.f32.gmra.mrb[0].mxu0 %v151
    %v252 = vpop.f32.mrb[0].mxu0
    %v253 = vadd.f32 0.0, %v252
    %v254 = vpop.f32.mrb[0].mxu0
    %255 = vdwg.mxu0
    %256 = vmatprep.subr.mxu0 0.0
    %257 = vmatpush1.msra.mxu0 %v46
    %258 = vmatprep.subr.mxu0 0.0
    %259 = vmatpush1.msra.mxu0 %v47
    %260 = vmatprep.subr.mxu0 0.0
    %261 = vmatpush1.msra.mxu0 %v48
    %262 = vmatprep.subr.mxu0 0.0
    %263 = vmatpush1.msra.mxu0 %v49
    %264 = vmatprep.subr.mxu0 0.0
    %265 = vmatpush1.msra.mxu0 %v50
    %266 = vmatprep.subr.mxu0 0.0
    %267 = vmatpush1.msra.mxu0 %v51
    %268 = vmatprep.subr.mxu0 0.0
    %269 = vmatpush1.msra.mxu0 %v52
    %270 = vmatprep.subr.mxu0 0.0
    %271 = vmatpush1.msra.mxu0 %v53
    %272 = vmatprep.subr.mxu0 0.0
    %273 = vmatpush1.msra.mxu0 %v54
    %274 = vmatprep.subr.mxu0 0.0
    %275 = vmatpush1.msra.mxu0 %v55
    %276 = vmatprep.subr.mxu0 0.0
    %277 = vmatpush1.msra.mxu0 %v56
    %278 = vmatprep.subr.mxu0 0.0
    %279 = vmatpush1.msra.mxu0 %v57
    %280 = vmatprep.subr.mxu0 0.0
    %281 = vmatpush1.msra.mxu0 %v58
    %282 = vmatprep.subr.mxu0 0.0
    %283 = vmatpush1.msra.mxu0 %v59
    %284 = vmatprep.subr.mxu0 0.0
    %285 = vmatpush1.msra.mxu0 %v60
    %286 = vmatprep.subr.mxu0 0.0
    %287 = vmatpush1.msra.mxu0 %v61
    %288 = vmatprep.subr.mxu0 0.0
    %289 = vmatpush1.msra.mxu0 %v62
    %290 = vmatprep.subr.mxu0 0.0
    %291 = vmatpush1.msra.mxu0 %v63
    %292 = vmatprep.subr.mxu0 0.0
    %293 = vmatpush1.msra.mxu0 %v64
    %294 = vmatprep.subr.mxu0 0.0
    %295 = vmatpush1.msra.mxu0 %v65
    %296 = vmatprep.subr.mxu0 0.0
    %297 = vmatpush1.msra.mxu0 %v66
    %298 = vmatprep.subr.mxu0 0.0
    %299 = vmatpush1.msra.mxu0 %v67
    %300 = vmatprep.subr.mxu0 0.0
    %301 = vmatpush1.msra.mxu0 %v68
    %302 = vmatprep.subr.mxu0 0.0
    %303 = vmatpush1.msra.mxu0 %v69
    %304 = vmatprep.subr.mxu0 0.0
    %305 = vmatpush1.msra.mxu0 %v70
    %306 = vmatprep.subr.mxu0 0.0
    %307 = vmatpush1.msra.mxu0 %v71
    %308 = vmatprep.subr.mxu0 0.0
    %309 = vmatpush1.msra.mxu0 %v72
    %310 = vmatprep.subr.mxu0 0.0
    %311 = vmatpush1.msra.mxu0 %v73
    %312 = vmatprep.subr.mxu0 0.0
    %313 = vmatpush1.msra.mxu0 %v74
    %314 = vmatprep.subr.mxu0 0.0
    %315 = vmatpush1.msra.mxu0 %v75
    %316 = vmatprep.subr.mxu0 0.0
    %317 = vmatpush1.msra.mxu0 %v76
    %318 = vmatprep.subr.mxu0 0.0
    %319 = vmatpush1.msra.mxu0 %v77
    %320 = vmatprep.mubr.f32.mxu0 %v160
    %321 = vmatmul.mubr.f32.gmra.mrb[0].mxu0 %v158
    %v322 = vpop.f32.mrb[0].mxu0
    %v323 = vadd.f32 %v253, %v322
    %v324 = vpop.f32.mrb[0].mxu0
    %325 = vdwg.mxu0
    %326 = vmatprep.subr.mxu0 0.0
    %327 = vmatpush1.msra.mxu0 %v78
    %328 = vmatprep.subr.mxu0 0.0
    %329 = vmatpush1.msra.mxu0 %v79
    %330 = vmatprep.subr.mxu0 0.0
    %331 = vmatpush1.msra.mxu0 %v80
    %332 = vmatprep.subr.mxu0 0.0
    %333 = vmatpush1.msra.mxu0 %v81
    %334 = vmatprep.subr.mxu0 0.0
    %335 = vmatpush1.msra.mxu0 %v82
    %336 = vmatprep.subr.mxu0 0.0
    %337 = vmatpush1.msra.mxu0 %v83
    %338 = vmatprep.subr.mxu0 0.0
    %339 = vmatpush1.msra.mxu0 %v84
    %340 = vmatprep.subr.mxu0 0.0
    %341 = vmatpush1.msra.mxu0 %v85
    %342 = vmatprep.subr.mxu0 0.0
    %343 = vmatpush1.msra.mxu0 %v86
    %344 = vmatprep.subr.mxu0 0.0
    %345 = vmatpush1.msra.mxu0 %v87
    %346 = vmatprep.subr.mxu0 0.0
    %347 = vmatpush1.msra.mxu0 %v88
    %348 = vmatprep.subr.mxu0 0.0
    %349 = vmatpush1.msra.mxu0 %v89
    %350 = vmatprep.subr.mxu0 0.0
    %351 = vmatpush1.msra.mxu0 %v90
    %352 = vmatprep.subr.mxu0 0.0
    %353 = vmatpush1.msra.mxu0 %v91
    %354 = vmatprep.subr.mxu0 0.0
    %355 = vmatpush1.msra.mxu0 %v92
    %356 = vmatprep.subr.mxu0 0.0
    %357 = vmatpush1.msra.mxu0 %v93
    %358 = vmatprep.subr.mxu0 0.0
    %359 = vmatpush1.msra.mxu0 %v94
    %360 = vmatprep.subr.mxu0 0.0
    %361 = vmatpush1.msra.mxu0 %v95
    %362 = vmatprep.subr.mxu0 0.0
    %363 = vmatpush1.msra.mxu0 %v96
    %364 = vmatprep.subr.mxu0 0.0
    %365 = vmatpush1.msra.mxu0 %v97
    %366 = vmatprep.subr.mxu0 0.0
    %367 = vmatpush1.msra.mxu0 %v98
    %368 = vmatprep.subr.mxu0 0.0
    %369 = vmatpush1.msra.mxu0 %v99
    %370 = vmatprep.subr.mxu0 0.0
    %371 = vmatpush1.msra.mxu0 %v100
    %372 = vmatprep.subr.mxu0 0.0
    %373 = vmatpush1.msra.mxu0 %v101
    %374 = vmatprep.subr.mxu0 0.0
    %375 = vmatpush1.msra.mxu0 %v102
    %376 = vmatprep.subr.mxu0 0.0
    %377 = vmatpush1.msra.mxu0 %v103
    %378 = vmatprep.subr.mxu0 0.0
    %379 = vmatpush1.msra.mxu0 %v104
    %380 = vmatprep.subr.mxu0 0.0
    %381 = vmatpush1.msra.mxu0 %v105
    %382 = vmatprep.subr.mxu0 0.0
    %383 = vmatpush1.msra.mxu0 %v106
    %384 = vmatprep.subr.mxu0 0.0
    %385 = vmatpush1.msra.mxu0 %v107
    %386 = vmatprep.subr.mxu0 0.0
    %387 = vmatpush1.msra.mxu0 %v108
    %388 = vmatprep.subr.mxu0 0.0
    %389 = vmatpush1.msra.mxu0 %v109
    %390 = vmatprep.mubr.f32.mxu0 %v176
    %391 = vmatmul.mubr.f32.gmra.mrb[0].mxu0 %v168
    %v392 = vpop.f32.mrb[0].mxu0
    %v393 = vadd.f32 %v323, %v392
    %v394 = vpop.f32.mrb[0].mxu0
    %395 = vdwg.mxu0
    %396 = vmatprep.subr.mxu0 0.0
    %397 = vmatpush1.msra.mxu0 %v110
    %398 = vmatprep.subr.mxu0 0.0
    %399 = vmatpush1.msra.mxu0 %v111
    %400 = vmatprep.subr.mxu0 0.0
    %401 = vmatpush1.msra.mxu0 %v112
    %402 = vmatprep.subr.mxu0 0.0
    %403 = vmatpush1.msra.mxu0 %v113
    %404 = vmatprep.subr.mxu0 0.0
    %405 = vmatpush1.msra.mxu0 %v114
    %406 = vmatprep.subr.mxu0 0.0
    %407 = vmatpush1.msra.mxu0 %v115
    %408 = vmatprep.subr.mxu0 0.0
    %409 = vmatpush1.msra.mxu0 %v116
    %410 = vmatprep.subr.mxu0 0.0
    %411 = vmatpush1.msra.mxu0 %v117
    %412 = vmatprep.subr.mxu0 0.0
    %413 = vmatpush1.msra.mxu0 %v118
    %414 = vmatprep.subr.mxu0 0.0
    %415 = vmatpush1.msra.mxu0 %v119
    %416 = vmatprep.subr.mxu0 0.0
    %417 = vmatpush1.msra.mxu0 %v120
    %418 = vmatprep.subr.mxu0 0.0
    %419 = vmatpush1.msra.mxu0 %v121
    %420 = vmatprep.subr.mxu0 0.0
    %421 = vmatpush1.msra.mxu0 %v122
    %422 = vmatprep.subr.mxu0 0.0
    %423 = vmatpush1.msra.mxu0 %v123
    %424 = vmatprep.subr.mxu0 0.0
    %425 = vmatpush1.msra.mxu0 %v124
    %426 = vmatprep.subr.mxu0 0.0
    %427 = vmatpush1.msra.mxu0 %v125
    %428 = vmatprep.subr.mxu0 0.0
    %429 = vmatpush1.msra.mxu0 %v126
    %430 = vmatprep.subr.mxu0 0.0
    %431 = vmatpush1.msra.mxu0 %v127
    %432 = vmatprep.subr.mxu0 0.0
    %433 = vmatpush1.msra.mxu0 %v128
    %434 = vmatprep.subr.mxu0 0.0
    %435 = vmatpush1.msra.mxu0 %v129
    %436 = vmatprep.subr.mxu0 0.0
    %437 = vmatpush1.msra.mxu0 %v130
    %438 = vmatprep.subr.mxu0 0.0
    %439 = vmatpush1.msra.mxu0 %v131
    %440 = vmatprep.subr.mxu0 0.0
    %441 = vmatpush1.msra.mxu0 %v132
    %442 = vmatprep.subr.mxu0 0.0
    %443 = vmatpush1.msra.mxu0 %v133
    %444 = vmatprep.subr.mxu0 0.0
    %445 = vmatpush1.msra.mxu0 %v134
    %446 = vmatprep.subr.mxu0 0.0
    %447 = vmatpush1.msra.mxu0 %v135
    %448 = vmatprep.subr.mxu0 0.0
    %449 = vmatpush1.msra.mxu0 %v136
    %450 = vmatprep.subr.mxu0 0.0
    %451 = vmatpush1.msra.mxu0 %v137
    %452 = vmatprep.subr.mxu0 0.0
    %453 = vmatpush1.msra.mxu0 %v138
    %454 = vmatprep.subr.mxu0 0.0
    %455 = vmatpush1.msra.mxu0 %v139
    %456 = vmatprep.subr.mxu0 0.0
    %457 = vmatpush1.msra.mxu0 %v140
    %458 = vmatprep.subr.mxu0 0.0
    %459 = vmatpush1.msra.mxu0 %v141
    %460 = vmatprep.mubr.f32.mxu0 %v177
    %461 = vmatmul.mubr.f32.gmra.mrb[0].mxu0 %v175
    %v462 = vpop.f32.mrb[0].mxu0
    %v463 = vadd.f32 %v393, %v462
    %v464 = vpop.f32.mrb[0].mxu0
    %465 = vdwg.mxu0
    %v466 = vmul.f32 %v463, 0.015625
    %v467 = vsub.f32 %v466, 0.6
    %v468 = vmul.f32 %v467, %v467
    %vm469 = vcmask 123904
    %470 = vst.msk [vmem:[#allocation2] sm:$0x3] %vm469, %v468
    // Predicated region
    $region10: #{tpu_custom_call.1} parent=1 // pred_check
      _
    $region11: #{tpu_custom_call.1} parent=1 // pred_check_branch
      %472 = sbr.rel (0) target = $region13
    $region12: #{tpu_custom_call.1} parent=1 // pred_region
      %s474 = ssub.s32 32, 32
      %475 = vsyncadd [#allocation3], %s474
      %s477 = sshll.u32 [#allocation2], 4
      %s478 = int_to_ptr.vmem [resolvable:$true] %s477
      %480 = dma.vmem_to_hbm [thread:$0]  %s478, 32, %s2, [#allocation3]
    $region13: #{tpu_custom_call.1} parent=1 // pred_fallthru
      _
    // Predicated region
    $region14: #{tpu_custom_call.1} parent=1 // pred_check
      _
    $region15: #{tpu_custom_call.1} parent=1 // pred_check_branch
      %482 = sbr.rel (0) target = $region17
    $region16: #{tpu_custom_call.1} parent=1 // pred_region
      %483 = dma.done [#allocation3], 32
    $region17: #{tpu_custom_call.1} parent=1 // pred_fallthru
      _
    %484 = vsyncpa [#allocation3], 1

</llo_original>
